<compile_context>
chip_gen: v5e
topology: v5e:2x2
jax: 0.10.0
libtpu: 0.0.40
codegen_flags: <defaults>
</compile_context>

<pallas_src>
import functools

import jax
import jax.numpy as jnp
import numpy as np
from jax.experimental import pallas as pl
from jax.experimental.pallas import tpu as pltpu


# ---------------------------------------------------------------------------
# Kernel: per batch tile, DMA the embedding rows into out[:, 1:, :] (HBM->HBM)
# and DMA a broadcast CLS row into out[:, 0, :] (VMEM->HBM).
#   cls_ref : (1, H)   VMEM (pipelined, constant block)
#   emb_hbm : (B, S, H)   raw HBM ref
#   out_hbm : (B, S+1, H) raw HBM ref
#   cls_buf : (TB, H)  VMEM scratch
#   sems    : DMA semaphores (2,)
# ---------------------------------------------------------------------------
def _cls_token_kernel(S, TB, REM, cls_ref, emb_hbm, out_hbm, cls_buf, sems):
    i = pl.program_id(0)
    b0 = pl.multiple_of(i * TB, TB)

    # Tiny: broadcast the CLS row across the tile's batch rows (hidden under the DMAs).
    cls_buf[...] = jnp.broadcast_to(cls_ref[...], cls_buf.shape)

    def issue(nrows):
        body = pltpu.make_async_copy(
            emb_hbm.at[pl.ds(b0, nrows)],                       # (nrows, S, H) in HBM
            out_hbm.at[pl.ds(b0, nrows), pl.ds(1, S), :],       # rows 1..S of the tile
            sems.at[0],
        )
        head = pltpu.make_async_copy(
            cls_buf.at[pl.ds(0, nrows)],                        # (nrows, H) in VMEM
            out_hbm.at[pl.ds(b0, nrows), 0, :],                 # row 0 of the tile
            sems.at[1],
        )
        body.start()
        head.start()
        body.wait()
        head.wait()

    if REM == 0:
        issue(TB)
    else:
        last = pl.num_programs(0) - 1

        @pl.when(i < last)
        def _():
            issue(TB)

        @pl.when(i == last)
        def _():
            issue(REM)


# ---------------------------------------------------------------------------
# Wrapper == TransTabCLSToken.forward
# ---------------------------------------------------------------------------
def transtab_cls_token(cls_weight, embedding, attention_mask=None, *,
                       target_tile_bytes=16 * 1024 * 1024):
    B, S, H = embedding.shape
    dtype = embedding.dtype
    isz = jnp.dtype(dtype).itemsize
    assert cls_weight.shape == (H,)

    # Batch tile: ~16 MiB per body DMA (pure copy -> amortize per-step overhead),
    # but at least 2 grid blocks when B >= 2 so both v7x TensorCores get work.
    row_bytes = S * H * isz
    tb = max(1, min(B, target_tile_bytes // max(row_bytes, 1)))
    if B >= 2:
        tb = min(tb, pl.cdiv(B, 2))
    num_tiles = pl.cdiv(B, tb)
    rem = B % tb

    cls2d = cls_weight.reshape(1, H).astype(dtype)   # cast once, outside the kernel

    kernel = functools.partial(_cls_token_kernel, S, tb, rem)

    emb_out = pl.pallas_call(
        kernel,
        out_shape=jax.ShapeDtypeStruct((B, S + 1, H), dtype),
        grid=(num_tiles,),
        in_specs=[
            pl.BlockSpec((1, H), lambda i: (0, 0)),     # CLS weight, resident VMEM block
            pl.BlockSpec(memory_space=pl.ANY),          # embedding stays in HBM
        ],
        out_specs=pl.BlockSpec(memory_space=pl.ANY),    # output written only via DMA
        scratch_shapes=[
            pltpu.VMEM((tb, H), dtype),                 # broadcast CLS rows
            pltpu.SemaphoreType.DMA((2,)),
        ],
        compiler_params=pltpu.CompilerParams(
            dimension_semantics=("parallel",),
            vmem_limit_bytes=32 * 1024 * 1024,          # far above our tiny VMEM need; safe on v5e/v6e/v7x
        ),
        cost_estimate=pl.CostEstimate(
            flops=0,
            transcendentals=0,
            bytes_accessed=int(2 * B * (S + 1) * H * isz),
        ),
    )(cls2d, embedding)

    outputs = {"embedding": emb_out}
    if attention_mask is not None:
        # Tiny (B*(S+1)*4 bytes) -> handled by plain XLA per perf review, keeping the
        # kernel's only output lane-dense.
        attention_mask = jnp.concatenate(
            [jnp.ones((B, 1), jnp.float32), attention_mask.astype(jnp.float32)], axis=1)
    outputs["attention_mask"] = attention_mask
    return outputs


# ---------------------------------------------------------------------------
# Pure-JAX reference (mirrors the PyTorch semantics)
# ---------------------------------------------------------------------------
def reference_cls_token(cls_weight, embedding, attention_mask=None):
    B, S, H = embedding.shape
    cls = jnp.broadcast_to(cls_weight.astype(embedding.dtype).reshape(1, 1, H), (B, 1, H))
    emb = jnp.concatenate([cls, embedding], axis=1)
    if attention_mask is not None:
        mask = jnp.concatenate(
            [jnp.ones((B, 1), jnp.float32), attention_mask.astype(jnp.float32)], axis=1)
    else:
        mask = None
    return {"embedding": emb, "attention_mask": mask}


def _check(out, ref):
    np.testing.assert_allclose(np.asarray(out["embedding"]),
                               np.asarray(ref["embedding"]), rtol=0, atol=0)
    if ref["attention_mask"] is None:
        assert out["attention_mask"] is None
    else:
        np.testing.assert_allclose(np.asarray(out["attention_mask"]),
                                   np.asarray(ref["attention_mask"]), rtol=0, atol=0)


if __name__ == "__main__":
    H = 128  # TransTab default hidden_dim
    key = jax.random.PRNGKey(0)
    k_cls, k_emb1, k_emb2, k_emb3, k_mask = jax.random.split(key, 5)

    # nn_init.uniform_(weight, a=-1/sqrt(H), b=1/sqrt(H))
    cls_weight = jax.random.uniform(k_cls, (H,), jnp.float32,
                                    -1.0 / np.sqrt(H), 1.0 / np.sqrt(H))

    # ---- test 1: small batch, with mask (matches module's typical use) ----
    B, S = 2, 8
    embedding = jax.random.normal(k_emb1, (B, S, H), jnp.float32)
    attention_mask = jnp.array([[1, 1, 1, 1, 1, 0, 0, 0],
                                [1, 1, 1, 1, 1, 1, 1, 1]], jnp.float32)
    out = transtab_cls_token(cls_weight, embedding, attention_mask)
    jax.block_until_ready(out)
    _check(out, reference_cls_token(cls_weight, embedding, attention_mask))
    assert out["embedding"].shape == (B, S + 1, H)
    assert out["attention_mask"].shape == (B, S + 1)

    # ---- test 2: B % tile != 0 (exercises the partial last-tile DMA path) ----
    B2, S2 = 5, 8
    embedding2 = jax.random.normal(k_emb2, (B2, S2, H), jnp.float32)
    attention_mask2 = (jax.random.uniform(k_mask, (B2, S2)) > 0.3).astype(jnp.float32)
    out2 = transtab_cls_token(cls_weight, embedding2, attention_mask2)
    jax.block_until_ready(out2)
    _check(out2, reference_cls_token(cls_weight, embedding2, attention_mask2))

    # ---- test 3: bf16 activations, no attention mask ----
    B3, S3 = 4, 8
    embedding3 = jax.random.normal(k_emb3, (B3, S3, H), jnp.float32).astype(jnp.bfloat16)
    out3 = transtab_cls_token(cls_weight, embedding3, None)
    jax.block_until_ready(out3["embedding"])
    _check(out3, reference_cls_token(cls_weight, embedding3, None))
    assert out3["embedding"].dtype == jnp.bfloat16

    print("KERNEL_OK")
</pallas_src>

<mosaic_0001>
module attributes {stable_mosaic.version = 11 : i64} {
  func.func @_cls_token_kernel(%arg0: i32, %arg1: memref<1x128xf32, #tpu.memory_space<vmem>>, %arg2: memref<2x8x128xf32, #tpu.memory_space<any>>, %arg3: memref<2x9x128xf32, #tpu.memory_space<any>>, %arg4: memref<1x128xf32, #tpu.memory_space<vmem>>, %arg5: memref<2x!tpu.dma_semaphore, #tpu.memory_space<semaphore_mem>>) attributes {dimension_semantics = [#tpu.dimension_semantics<parallel>], iteration_bounds = array<i64: 2>, scalar_prefetch = 0 : i64, scratch_operands = 2 : i64, tpu.core_type = #tpu.core_type<tc>, window_params = [{pipeline_mode = #tpu.pipeline_mode<synchronous>, transform_indices = @transform_0, window_bounds = array<i64: 1, 128>}, {}, {}]} {
    %c1_i32 = arith.constant 1 : i32
    %0 = arith.muli %arg0, %c1_i32 : i32
    %1 = tpu.assume_multiple %0, 1 : i32
    %c0 = arith.constant 0 : index
    %c0_0 = arith.constant 0 : index
    %2 = vector.load %arg1[%c0, %c0_0] : memref<1x128xf32, #tpu.memory_space<vmem>>, vector<1x128xf32>
    %c0_1 = arith.constant 0 : index
    %c0_2 = arith.constant 0 : index
    %3 = vector.load %arg4[%c0_1, %c0_2] : memref<1x128xf32, #tpu.memory_space<vmem>>, vector<1x128xf32>
    tpu.vector_store %arg4[%c0_1, %c0_2], %2 {strides = array<i32>} : memref<1x128xf32, #tpu.memory_space<vmem>>, vector<1x128xf32>,
    %c0_i32 = arith.constant 0 : i32
    %c0_i32_3 = arith.constant 0 : i32
    %c0_i32_4 = arith.constant 0 : i32
    %4 = tpu.memref_slice %arg2[%1, %c0_i32_3, %c0_i32_4] : memref<2x8x128xf32, #tpu.memory_space<any>> -> memref<1x8x128xf32, #tpu.memory_space<any>>
    %c1_i32_5 = arith.constant 1 : i32
    %c0_i32_6 = arith.constant 0 : i32
    %5 = tpu.memref_slice %arg3[%1, %c1_i32_5, %c0_i32_6] : memref<2x9x128xf32, #tpu.memory_space<any>> -> memref<1x8x128xf32, #tpu.memory_space<any>>
    %6 = tpu.memref_slice %arg5[%c0_i32] : memref<2x!tpu.dma_semaphore, #tpu.memory_space<semaphore_mem>> -> memref<1x!tpu.dma_semaphore, #tpu.memory_space<semaphore_mem>>
    %7 = tpu.memref_squeeze %6 : memref<1x!tpu.dma_semaphore, #tpu.memory_space<semaphore_mem>> -> memref<!tpu.dma_semaphore, #tpu.memory_space<semaphore_mem>>
    tpu.enqueue_dma source(%4 : memref<1x8x128xf32, #tpu.memory_space<any>>) target(%5 : memref<1x8x128xf32, #tpu.memory_space<any>>) target_semaphore(%7 : memref<!tpu.dma_semaphore, #tpu.memory_space<semaphore_mem>>)
    %c0_i32_7 = arith.constant 0 : i32
    %c1_i32_8 = arith.constant 1 : i32
    %c0_i32_9 = arith.constant 0 : i32
    %c0_i32_10 = arith.constant 0 : i32
    %8 = tpu.memref_slice %arg4[%c0_i32_9, %c0_i32_10] : memref<1x128xf32, #tpu.memory_space<vmem>> -> memref<1x128xf32, #tpu.memory_space<vmem>>
    %c0_i32_11 = arith.constant 0 : i32
    %9 = tpu.memref_slice %arg3[%1, %c0_i32_7, %c0_i32_11] : memref<2x9x128xf32, #tpu.memory_space<any>> -> memref<1x1x128xf32, #tpu.memory_space<any>>
    %10 = tpu.memref_squeeze %9 : memref<1x1x128xf32, #tpu.memory_space<any>> -> memref<1x128xf32, #tpu.memory_space<any>>
    %11 = tpu.memref_slice %arg5[%c1_i32_8] : memref<2x!tpu.dma_semaphore, #tpu.memory_space<semaphore_mem>> -> memref<1x!tpu.dma_semaphore, #tpu.memory_space<semaphore_mem>>
    %12 = tpu.memref_squeeze %11 : memref<1x!tpu.dma_semaphore, #tpu.memory_space<semaphore_mem>> -> memref<!tpu.dma_semaphore, #tpu.memory_space<semaphore_mem>>
    tpu.enqueue_dma source(%8 : memref<1x128xf32, #tpu.memory_space<vmem>>) target(%10 : memref<1x128xf32, #tpu.memory_space<any>>) target_semaphore(%12 : memref<!tpu.dma_semaphore, #tpu.memory_space<semaphore_mem>>)
    %c0_i32_12 = arith.constant 0 : i32
    %c0_i32_13 = arith.constant 0 : i32
    %c0_i32_14 = arith.constant 0 : i32
    %13 = tpu.memref_slice %arg2[%1, %c0_i32_13, %c0_i32_14] : memref<2x8x128xf32, #tpu.memory_space<any>> -> memref<1x8x128xf32, #tpu.memory_space<any>>
    %c1_i32_15 = arith.constant 1 : i32
    %c0_i32_16 = arith.constant 0 : i32
    %14 = tpu.memref_slice %arg3[%1, %c1_i32_15, %c0_i32_16] : memref<2x9x128xf32, #tpu.memory_space<any>> -> memref<1x8x128xf32, #tpu.memory_space<any>>
    %15 = tpu.memref_slice %arg5[%c0_i32_12] : memref<2x!tpu.dma_semaphore, #tpu.memory_space<semaphore_mem>> -> memref<1x!tpu.dma_semaphore, #tpu.memory_space<semaphore_mem>>
    %16 = tpu.memref_squeeze %15 : memref<1x!tpu.dma_semaphore, #tpu.memory_space<semaphore_mem>> -> memref<!tpu.dma_semaphore, #tpu.memory_space<semaphore_mem>>
    tpu.wait_dma2 semaphore(%16 : memref<!tpu.dma_semaphore, #tpu.memory_space<semaphore_mem>>) src(%13 : memref<1x8x128xf32, #tpu.memory_space<any>>) dst(%14 : memref<1x8x128xf32, #tpu.memory_space<any>>)
    %c0_i32_17 = arith.constant 0 : i32
    %c1_i32_18 = arith.constant 1 : i32
    %c0_i32_19 = arith.constant 0 : i32
    %c0_i32_20 = arith.constant 0 : i32
    %17 = tpu.memref_slice %arg4[%c0_i32_19, %c0_i32_20] : memref<1x128xf32, #tpu.memory_space<vmem>> -> memref<1x128xf32, #tpu.memory_space<vmem>>
    %c0_i32_21 = arith.constant 0 : i32
    %18 = tpu.memref_slice %arg3[%1, %c0_i32_17, %c0_i32_21] : memref<2x9x128xf32, #tpu.memory_space<any>> -> memref<1x1x128xf32, #tpu.memory_space<any>>
    %19 = tpu.memref_squeeze %18 : memref<1x1x128xf32, #tpu.memory_space<any>> -> memref<1x128xf32, #tpu.memory_space<any>>
    %20 = tpu.memref_slice %arg5[%c1_i32_18] : memref<2x!tpu.dma_semaphore, #tpu.memory_space<semaphore_mem>> -> memref<1x!tpu.dma_semaphore, #tpu.memory_space<semaphore_mem>>
    %21 = tpu.memref_squeeze %20 : memref<1x!tpu.dma_semaphore, #tpu.memory_space<semaphore_mem>> -> memref<!tpu.dma_semaphore, #tpu.memory_space<semaphore_mem>>
    tpu.wait_dma2 semaphore(%21 : memref<!tpu.dma_semaphore, #tpu.memory_space<semaphore_mem>>) src(%17 : memref<1x128xf32, #tpu.memory_space<vmem>>) dst(%19 : memref<1x128xf32, #tpu.memory_space<any>>)
    return
  }
  func.func @transform_0(%arg0: i32) -> (i32, i32) {
    %c0_i32 = arith.constant 0 : i32
    %c0_i32_0 = arith.constant 0 : i32
    %c0_i32_1 = arith.constant 0 : i32
    return %c0_i32, %c0_i32_0 : i32, i32
  }
}

</mosaic_0001>

<llo_original>
// kernel: tpu_custom_call.1
$region0: #{tpu_custom_call.1}
  #allocation0 [shape = 'u32[]', space=smem, size = 0x4, offset = 0x4, fixed_abs, tag = 'smem constant byte address 0x4 - core index']
  #allocation1 [shape = 'u32[72,128]{1,0:T(1,128)}', space=vmem, size = 0x9000, scoped, tag = 'internal scratch']
  #allocation2 [shape = 'f32[1,128]{1,0:T(1,128)}', space=vmem, size = 0x200, scoped, tag = 'scratch operand']
  #allocation3 [shape = 's32[2]{0}', space=sflag, size = 0x8, scoped, tag = 'scratch operand']
  #allocation6 [shape = 's32[]', space=sflag, size = 0x4, offset = 0, fixed_abs, tag = 'sflag constant byte address 0x0 - dummy sync flag']
  #allocation7 [shape = 's32[]', space=sflag, size = 0x4, offset = 0, fixed_abs, tag = 'sflag constant byte address 0x0 - dummy sync flag']
  #allocation8 [shape = 'u32[]', space=smem, size = 0x4, offset = 0x44, fixed_abs, tag = 'smem constant byte address 0x44 - assertion arg 0']
  #allocation9 [shape = 'u32[]', space=smem, size = 0x4, offset = 0x48, fixed_abs, tag = 'smem constant byte address 0x48 - assertion arg 1']
  #allocation10 [shape = 's32[]', space=sflag, size = 0x4, offset = 0, fixed_abs, tag = 'sflag constant byte address 0x0 - dummy sync flag']
  %s0 = inlined_call_operand.hbm [shape: f32[1,128], index: 0, kind: input, shape index: {}]
  %s1 = inlined_call_operand.hbm [shape: f32[2,8,128], index: 1, kind: input, shape index: {}]
  %s2 = inlined_call_operand.vmem [shape: f32[2,9,128], index: 2, kind: output, shape index: {}]
  %s3 = sld [smem:[#allocation0]]
  $region63: #{tpu_custom_call.1} parent=0
    _
  %s5 = ssub.s32 1, %s3
  %s6 = scalar_select 0, %s5, %s3
  $region1: #{tpu_custom_call.1} parent=0
    #allocation4 [shape = 'u8[512]{0}', space=vmem, size = 0x400, scoped, tag = 'input window, operand 0, single buffered']
    #allocation5 [shape = 's32[2]{0}', space=sflag, size = 0x8, scoped, tag = 'scoped memory for tpu_custom_call.1']
    %7 = vsyncpa [#allocation5], 0
    loop: start=0, step=1, limit=3
    $region2: #{tpu_custom_call.1} parent=1 // loop_pre_header
      _
    $region3: #{tpu_custom_call.1} parent=1 // loop_header
      %s9 = sphi 0, %s13
      %p10 = scmp.ge.s32.totalorder %s9, 3
      %s16 = sphi 0, %s16
      %s18 = sphi 0, %s16
      %s26 = sphi 0, %s18
    $region4: #{tpu_custom_call.1} parent=1 // loop_header_branch
      %12 = sbr.rel (%p10) target = $region8
    $region5: #{tpu_custom_call.1} parent=1 // loop_body
      %s14 = ssub.s32 %s9, 1
      %s15 = sadd.s32 %s9, 1
      %s17 = sadd.s32 %s16, 1
      %p19 = scmp.eq.s32.totalorder %s9, 1
      %p20 = scmp.ne.s32.totalorder %s16, %s18
      %p21 = scmp.eq.s32.totalorder %s9, 0
      %p22 = por %p20, %p21
      %p23 = scmp.ne.s32.totalorder %s16, %s18
      %p24 = scmp.eq.s32.totalorder %s14, 1
      %p25 = por %p23, %p24
      %p27 = scmp.ne.s32.totalorder %s18, %s26
      %p28 = scmp.eq.s32.totalorder %s14, 0
      %p29 = por %p27, %p28
      %p30 = scmp.le.s32.totalorder 1, %s9
      // Predicated region
      $region9: #{tpu_custom_call.1} parent=5 // pred_check
        %p31 = pneg %p30
      $region10: #{tpu_custom_call.1} parent=5 // pred_check_branch
        %33 = sbr.rel (%p31) target = $region12
      $region11: #{tpu_custom_call.1} parent=5 // pred_region
        %s34 = ssub.s32 %s9, 1
        // Predicated region
        $region13: #{tpu_custom_call.1} parent=11 // pred_check
          %p35 = pneg %p29
        $region14: #{tpu_custom_call.1} parent=11 // pred_check_branch
          %37 = sbr.rel (%p35) target = $region16
        $region15: #{tpu_custom_call.1} parent=11 // pred_region
          %39 = vsyncadd [#allocation5], 0
          %s41 = sshll.u32 %s0, 4
          %s42 = int_to_ptr.hbm [resolvable:$true] %s41
          %s43 = sshll.u32 [#allocation4], 4
          %s44 = int_to_ptr.vmem [resolvable:$true] %s43
          %46 = dma.hbm_to_vmem [thread:$0]  %s42, 16, %s44, [#allocation5]
        $region16: #{tpu_custom_call.1} parent=11 // pred_fallthru
          _
      $region12: #{tpu_custom_call.1} parent=5 // pred_fallthru
        _
      %p47 = scmp.lt.s32.totalorder %s9, 2
      // Predicated region
      $region17: #{tpu_custom_call.1} parent=5 // pred_check
        %p48 = pneg %p47
      $region18: #{tpu_custom_call.1} parent=5 // pred_check_branch
        %50 = sbr.rel (%p48) target = $region20
      $region19: #{tpu_custom_call.1} parent=5 // pred_region
        _
      $region20: #{tpu_custom_call.1} parent=5 // pred_fallthru
        _
      %p51 = scmp.le.s32.totalorder 1, %s9
      // Predicated region
      $region21: #{tpu_custom_call.1} parent=5 // pred_check
        %p52 = pneg %p51
      $region22: #{tpu_custom_call.1} parent=5 // pred_check_branch
        %54 = sbr.rel (%p52) target = $region24
      $region23: #{tpu_custom_call.1} parent=5 // pred_region
        %s55 = ssub.s32 %s9, 1
        // Predicated region
        $region25: #{tpu_custom_call.1} parent=23 // pred_check
          %p56 = pneg %p29
        $region26: #{tpu_custom_call.1} parent=23 // pred_check_branch
          %58 = sbr.rel (%p56) target = $region28
        $region27: #{tpu_custom_call.1} parent=23 // pred_region
          %60 = dma.done [#allocation5], 16
        $region28: #{tpu_custom_call.1} parent=23 // pred_fallthru
          _
        %p61 = pneg %p29
        %p62 = pneg %p25
        %v63 = vld [vmem:[#allocation4] sm:$0x1]
        %64 = vst [vmem:[#allocation2] sm:$0x1] %v63
        %s65 = smul.u32 %s14, 8
        %s66 = scalar_lea.hbm %s1, %s65
        %s67 = smul.u32 %s14, 16
        %s68 = sadd.s32 1, %s67
        %s69 = scalar_lea.vmem %s2, %s68
        // Predicated region
        $region29: #{tpu_custom_call.1} parent=23 // pred_check
          _
        $region30: #{tpu_custom_call.1} parent=23 // pred_check_branch
          %71 = sbr.rel target = $region32
        $region31: #{tpu_custom_call.1} parent=23 // pred_region
          %72 = sst [smem:[#allocation8]] [#allocation7]
          %73 = sst [smem:[#allocation9]] [#allocation6]
        $region32: #{tpu_custom_call.1} parent=23 // pred_fallthru
          _
        %75 = shalt.err (0)
        %s77 = sshll.u32 %s66, 4
        %s78 = int_to_ptr.hbm [resolvable:$true] %s77
        %s79 = sshll.u32 %s69, 4
        %s80 = int_to_ptr.vmem [resolvable:$true] %s79
        %82 = dma.hbm_to_vmem [thread:$0]  %s78, 128, %s80, [#allocation3]
        %s83 = scalar_lea.vmem %s2, %s67
        %s84 = scalar_lea.sflag [#allocation3], 1
        // Predicated region
        $region33: #{tpu_custom_call.1} parent=23 // pred_check
          _
        $region34: #{tpu_custom_call.1} parent=23 // pred_check_branch
          %86 = sbr.rel target = $region36
        $region35: #{tpu_custom_call.1} parent=23 // pred_region
          // Predicated region
          $region48: #{tpu_custom_call.1} parent=35 // pred_check
            _
          $region49: #{tpu_custom_call.1} parent=35 // pred_check_branch
            %102 = sbr.rel (0) target = $region51
          $region50: #{tpu_custom_call.1} parent=35 // pred_region
            %s104 = ssub.s32 2, 1
            loop: start=0, step=1, limit=1
            $region52: #{tpu_custom_call.1} parent=50 // loop_pre_header
              _
            $region53: #{tpu_custom_call.1} parent=50 // loop_header
              %s106 = sphi 0, %s110
              %p107 = scmp.ge.s32.totalorder %s106, 1
              %s111 = sphi [#allocation2], [#allocation2]
              %s112 = sphi %s83, %s83
            $region54: #{tpu_custom_call.1} parent=50 // loop_header_branch
              %109 = sbr.rel (%p107) target = $region58
            $region55: #{tpu_custom_call.1} parent=50 // loop_body
              %v113 = vld [vmem:[%s111] sm:%s104]
              %114 = vst [vmem:[%s112] sm:%s104] %v113
            $region56: #{tpu_custom_call.1} parent=50 // loop_footer
              %s110 = sadd.s32 1, %s106
            $region57: #{tpu_custom_call.1} parent=50 // loop_footer_branch
              %105 = sbr.rel target = $region53
            $region58: #{tpu_custom_call.1} parent=50 // loop_exit
              _
          $region51: #{tpu_custom_call.1} parent=35 // pred_fallthru
            _
        $region36: #{tpu_custom_call.1} parent=23 // pred_fallthru
          _
        // Predicated region
        $region37: #{tpu_custom_call.1} parent=23 // pred_check
          _
        $region38: #{tpu_custom_call.1} parent=23 // pred_check_branch
          %88 = sbr.rel (0) target = $region40
        $region39: #{tpu_custom_call.1} parent=23 // pred_region
          %s90 = ssub.s32 2, 1
          loop: start=0, step=1, limit=1
          $region41: #{tpu_custom_call.1} parent=39 // loop_pre_header
            _
          $region42: #{tpu_custom_call.1} parent=39 // loop_header
            %s92 = sphi 0, %s96
            %p93 = scmp.ge.s32.totalorder %s92, 1
            %s97 = sphi [#allocation2], [#allocation2]
            %s98 = sphi %s83, %s83
          $region43: #{tpu_custom_call.1} parent=39 // loop_header_branch
            %95 = sbr.rel (%p93) target = $region47
          $region44: #{tpu_custom_call.1} parent=39 // loop_body
            %v99 = vld [vmem:[%s97] sm:%s90]
            %100 = vst [vmem:[%s98] sm:%s90] %v99
          $region45: #{tpu_custom_call.1} parent=39 // loop_footer
            %s96 = sadd.s32 1, %s92
          $region46: #{tpu_custom_call.1} parent=39 // loop_footer_branch
            %91 = sbr.rel target = $region42
          $region47: #{tpu_custom_call.1} parent=39 // loop_exit
            _
        $region40: #{tpu_custom_call.1} parent=23 // pred_fallthru
          _
        // Predicated region
        $region59: #{tpu_custom_call.1} parent=23 // pred_check
          _
        $region60: #{tpu_custom_call.1} parent=23 // pred_check_branch
          %117 = sbr.rel (0) target = $region62
        $region61: #{tpu_custom_call.1} parent=23 // pred_region
          %118 = vsyncadd %s84, 16
        $region62: #{tpu_custom_call.1} parent=23 // pred_fallthru
          _
        %s119 = smul.u32 1, 8
        %s120 = smul.u32 %s119, 1
        %s121 = sshll.u32 %s120, 4
        %122 = dma.done [#allocation3], %s121
        %s123 = smul.u32 1, 1
        %s124 = sshll.u32 %s123, 4
        %125 = dma.done %s84, %s124
      $region24: #{tpu_custom_call.1} parent=5 // pred_fallthru
        _
    $region6: #{tpu_custom_call.1} parent=1 // loop_footer
      %s13 = sadd.s32 1, %s9
    $region7: #{tpu_custom_call.1} parent=1 // loop_footer_branch
      %8 = sbr.rel target = $region3
    $region8: #{tpu_custom_call.1} parent=1 // loop_exit
      _
    %126 = vsyncpa [#allocation5], 1
    %s127 = scalar_lea.sflag [#allocation5], 1
    %128 = vsyncpa %s127, 1
  %129 = vsyncmov [#allocation3]
  %s130 = vpop.sfrf %129
  %p131 = scmp.eq.s32.totalorder %s130, 0
  %p132 = pneg %p131
  %134 = shalt.err (%p132)
  %s135 = scalar_lea.sflag [#allocation3], 1
  %136 = vsyncmov %s135
  %s137 = vpop.sfrf %136
  %p138 = scmp.eq.s32.totalorder %s137, 0
  %p139 = pneg %p138
  %141 = shalt.err (%p139)

</llo_original>
